<compile_context>
chip_gen: v6e
topology: v6e:2x2x1
jax: 0.10.0
libtpu: 0.0.40
codegen_flags: <defaults>
</compile_context>

<pallas_src>
import jax
import jax.numpy as jnp
from jax.experimental import pallas as pl
from jax.experimental.pallas import tpu as pltpu

_LANE = 128


def _mish_kernel(x_ref, o_ref):
    x = x_ref[...]
    xf = x.astype(jnp.float32)
    # mish(x) = x * tanh(ln(1 + e^x)).  With u = 1 + e^x:
    #   tanh(ln u) = (u^2 - 1) / (u^2 + 1) = t / (t + 2),  t = e^x (e^x + 2)
    # -> only 2 EUP pushes (exp, reciprocal) instead of 3 (exp, log1p, tanh).
    e = jnp.exp(jnp.minimum(xf, 20.0))  # clamp: for x > 20, mish(x) == x in f32
    t = e * (e + 2.0)
    y = xf * (t * pl.reciprocal(t + 2.0, approx=False))  # keep divide on EUP
    o_ref[...] = y.astype(o_ref.dtype)


def _mish_jnp(x):
    """Plain-jnp mish for the < 128-element ragged tail (same formula)."""
    xf = x.astype(jnp.float32)
    e = jnp.exp(jnp.minimum(xf, 20.0))
    t = e * (e + 2.0)
    return (xf * (t / (t + 2.0))).astype(x.dtype)


def _sublane_multiple(itemsize: int) -> int:
    # Rows per vreg along sublanes: f32 -> 8, bf16 -> 16, int8/fp8 -> 32.
    return {4: 8, 2: 16, 1: 32}.get(itemsize, 8)


def _default_tile_rows(itemsize: int) -> int:
    # In-flight VMEM with default double buffering:
    #   2 operands * 2 buffers * (tr * 128 * itemsize)
    # v5e scoped-VMEM default is 16 MiB -> target  8 MiB in-flight (tr=4096 f32)
    # v6e/v7x scoped default is 32 MiB -> target 16 MiB in-flight (tr=8192 f32)
    kind = ""
    try:
        kind = jax.devices()[0].device_kind.lower()
    except Exception:
        pass
    is_v5e = ("v5 lite" in kind) or ("v5e" in kind) or ("v5lite" in kind)
    budget = (8 << 20) if is_v5e else (16 << 20)
    block_bytes = budget // 4  # 2 operands x double buffered
    return max(512, block_bytes // (_LANE * itemsize))


def mish_pallas(x: jax.Array, *, tile_rows: int | None = None) -> jax.Array:
    """Elementwise mish on an array of any shape (matches torch semantics)."""
    orig_shape = x.shape
    n = x.size
    if n == 0:
        return x

    itemsize = jnp.dtype(x.dtype).itemsize
    sub = _sublane_multiple(itemsize)
    if tile_rows is None:
        tile_rows = _default_tile_rows(itemsize)

    flat = x.reshape(-1)
    n_aligned = (n // _LANE) * _LANE

    tail_out = None
    if n_aligned < n:
        # < 128-element tail: plain jnp, instead of a full-tensor pad copy.
        tail_out = _mish_jnp(flat[n_aligned:])

    if n_aligned == 0:
        return tail_out.reshape(orig_shape)

    rows = n_aligned // _LANE
    slab = flat[:n_aligned].reshape(rows, _LANE)  # pure reshape when aligned

    # Block rows: multiple of the dtype's sublane packing, never bigger than
    # the array needs.
    tr = min(tile_rows, -(-rows // sub) * sub)
    # If a large (>= 1 MiB) tensor would be a single block, split it so the
    # "parallel" grid axis can shard across v7x's two TensorCores.
    if pl.cdiv(rows, tr) < 2 and rows * _LANE * itemsize >= (1 << 20):
        tr = -(-pl.cdiv(rows, 2) // sub) * sub
    grid = (pl.cdiv(rows, tr),)

    out = pl.pallas_call(
        _mish_kernel,
        out_shape=jax.ShapeDtypeStruct((rows, _LANE), x.dtype),
        grid_spec=pltpu.PrefetchScalarGridSpec(
            num_scalar_prefetch=0,
            grid=grid,
            in_specs=[pl.BlockSpec((tr, _LANE), lambda i: (i, 0))],
            out_specs=pl.BlockSpec((tr, _LANE), lambda i: (i, 0)),
        ),
        compiler_params=pltpu.CompilerParams(
            dimension_semantics=("parallel",),
        ),
        cost_estimate=pl.CostEstimate(
            flops=6 * n_aligned,
            transcendentals=2 * n_aligned,
            bytes_accessed=2 * n_aligned * itemsize,
        ),
    )(slab)

    if tail_out is not None:
        return jnp.concatenate([out.reshape(-1), tail_out]).reshape(orig_shape)
    return out.reshape(orig_shape)


def mish_ref(x: jax.Array) -> jax.Array:
    xf = x.astype(jnp.float32)
    return (xf * jnp.tanh(jax.nn.softplus(xf))).astype(x.dtype)


if __name__ == "__main__":
    key = jax.random.PRNGKey(0)

    # Primary case: (N, C, H, W) activation tensor, element count % 128 == 0.
    x = jax.random.normal(key, (2, 4, 16, 16), dtype=jnp.float32)
    y = mish_pallas(x)
    jax.block_until_ready(y)
    y_ref = mish_ref(x)
    assert y.shape == x.shape and y.dtype == x.dtype
    assert jnp.allclose(y, y_ref, atol=1e-5, rtol=1e-5)

    # Ragged case: element count not a multiple of 128 (prefix kernel + jnp tail).
    k1, k2 = jax.random.split(key)
    xr = jax.random.normal(k1, (8, 130), dtype=jnp.float32)
    yr = mish_pallas(xr)
    jax.block_until_ready(yr)
    assert yr.shape == xr.shape and yr.dtype == xr.dtype
    assert jnp.allclose(yr, mish_ref(xr), atol=1e-5, rtol=1e-5)

    # bf16 case (packed sublanes path).
    xb = jax.random.normal(k2, (2, 16, 128), dtype=jnp.bfloat16)
    yb = mish_pallas(xb)
    jax.block_until_ready(yb)
    assert yb.shape == xb.shape and yb.dtype == xb.dtype
    assert jnp.allclose(
        yb.astype(jnp.float32), mish_ref(xb).astype(jnp.float32), atol=2e-2, rtol=2e-2
    )

    print("KERNEL_OK")
</pallas_src>

<mosaic_0001>
module attributes {stable_mosaic.version = 11 : i64} {
  func.func @_mish_kernel(%arg0: i32, %arg1: memref<16x128xf32, #tpu.memory_space<vmem>>, %arg2: memref<16x128xf32, #tpu.memory_space<vmem>>) attributes {dimension_semantics = [#tpu.dimension_semantics<parallel>], iteration_bounds = array<i64: 1>, scalar_prefetch = 0 : i64, scratch_operands = 0 : i64, tpu.core_type = #tpu.core_type<tc>, window_params = [{transform_indices = @transform_0, window_bounds = array<i64: 16, 128>}, {transform_indices = @transform_1, window_bounds = array<i64: 16, 128>}]} {
    %c0 = arith.constant 0 : index
    %c0_0 = arith.constant 0 : index
    %0 = vector.load %arg1[%c0, %c0_0] : memref<16x128xf32, #tpu.memory_space<vmem>>, vector<16x128xf32>
    %cst = arith.constant 2.000000e+01 : f32
    %1 = vector.broadcast %cst : f32 to vector<16x128xf32>
    %2 = arith.minimumf %0, %1 : vector<16x128xf32>
    %3 = math.exp %2 : vector<16x128xf32>
    %cst_1 = arith.constant 2.000000e+00 : f32
    %4 = vector.broadcast %cst_1 : f32 to vector<16x128xf32>
    %5 = arith.addf %3, %4 : vector<16x128xf32>
    %6 = arith.mulf %3, %5 : vector<16x128xf32>
    %cst_2 = arith.constant 2.000000e+00 : f32
    %7 = vector.broadcast %cst_2 : f32 to vector<16x128xf32>
    %8 = arith.addf %6, %7 : vector<16x128xf32>
    %9 = tpu.reciprocal %8 : vector<16x128xf32> -> vector<16x128xf32>
    %10 = arith.mulf %6, %9 : vector<16x128xf32>
    %11 = arith.mulf %0, %10 : vector<16x128xf32>
    %c0_3 = arith.constant 0 : index
    %c0_4 = arith.constant 0 : index
    %12 = vector.load %arg2[%c0_3, %c0_4] : memref<16x128xf32, #tpu.memory_space<vmem>>, vector<16x128xf32>
    tpu.vector_store %arg2[%c0_3, %c0_4], %11 {strides = array<i32>} : memref<16x128xf32, #tpu.memory_space<vmem>>, vector<16x128xf32>,
    return
  }
  func.func @transform_0(%arg0: i32) -> (i32, i32) {
    %c0_i32 = arith.constant 0 : i32
    %c0_i32_0 = arith.constant 0 : i32
    return %arg0, %c0_i32 : i32, i32
  }
  func.func @transform_1(%arg0: i32) -> (i32, i32) {
    %c0_i32 = arith.constant 0 : i32
    %c0_i32_0 = arith.constant 0 : i32
    return %arg0, %c0_i32 : i32, i32
  }
}

</mosaic_0001>

<llo_original>
// kernel: tpu_custom_call.1
$region0: #{tpu_custom_call.1}
  #allocation0 [shape = 'u32[]', space=smem, size = 0x4, offset = 0x4, fixed_abs, tag = 'smem constant byte address 0x4 - core index']
  #allocation1 [shape = 'u32[144,128]{1,0:T(1,128)}', space=vmem, size = 0x12000, scoped, tag = 'internal scratch']
  %s0 = inlined_call_operand.hbm [shape: f32[16,128], index: 0, kind: input, shape index: {}]
  %s1 = inlined_call_operand.hbm [shape: f32[16,128], index: 1, kind: output, shape index: {}]
  %s2 = sld [smem:[#allocation0]]
  $region18: #{tpu_custom_call.1} parent=0
    _
  %s4 = ssub.s32 1, %s2
  %s5 = scalar_select 0, %s4, %s2
  $region1: #{tpu_custom_call.1} parent=0
    #allocation2 [shape = 'u8[8192]{0}', space=vmem, size = 0x2000, scoped, tag = 'input window, operand 0, single buffered']
    #allocation3 [shape = 's32[1]{0}', space=sflag, size = 0x4, scoped, tag = 'scoped memory for tpu_custom_call.1']
    #allocation4 [shape = 's32[1]{0}', space=sflag, size = 0x4, scoped, tag = 'scoped memory for tpu_custom_call.1']
    #allocation5 [shape = 'u8[8192]{0}', space=vmem, size = 0x2000, scoped, tag = 'output window, operand 0, single buffered']
    %6 = vsyncpa [#allocation3], 0
    %7 = vsyncpa [#allocation4], 0
    // Predicated region
    $region2: #{tpu_custom_call.1} parent=1 // pred_check
      _
    $region3: #{tpu_custom_call.1} parent=1 // pred_check_branch
      %9 = sbr.rel (0) target = $region5
    $region4: #{tpu_custom_call.1} parent=1 // pred_region
      %s11 = ssub.s32 256, 256
      %12 = vsyncadd [#allocation3], %s11
      %s13 = sshll.u32 [#allocation2], 4
      %s14 = int_to_ptr.vmem [resolvable:$true] %s13
      %19 = dma.hbm_to_vmem [thread:$0]  %s0, 256, %s14, [#allocation3], 128, 128, 8
    $region5: #{tpu_custom_call.1} parent=1 // pred_fallthru
      _
    // Predicated region
    $region6: #{tpu_custom_call.1} parent=1 // pred_check
      _
    $region7: #{tpu_custom_call.1} parent=1 // pred_check_branch
      %21 = sbr.rel (0) target = $region9
    $region8: #{tpu_custom_call.1} parent=1 // pred_region
      %22 = dma.done [#allocation3], 256
    $region9: #{tpu_custom_call.1} parent=1 // pred_fallthru
      _
    %v23 = vld [vmem:[#allocation2] sm:$0xff]
    %v24 = vld [vmem:[#allocation2 + $0x8] sm:$0xff]
    %v25 = vmin.f32 %v23, 20.0
    %v26 = vmin.f32 %v24, 20.0
    %v27 = vmul.f32 %v25, 1.442695
    %v28 = vpow.pop %v27
    %v29 = vmul.f32 %v26, 1.442695
    %v30 = vpow.pop %v29
    %v31 = vadd.f32 %v28, 2.0
    %v32 = vadd.f32 %v30, 2.0
    %v33 = vmul.f32 %v28, %v31
    %v34 = vmul.f32 %v30, %v32
    %v35 = vadd.f32 %v33, 2.0
    %v36 = vadd.f32 %v34, 2.0
    %v37 = vrcp.pop %v35
    %v38 = vrcp.pop %v36
    %v39 = vmul.f32 %v33, %v37
    %v40 = vmul.f32 %v34, %v38
    %v41 = vmul.f32 %v23, %v39
    %v42 = vmul.f32 %v24, %v40
    %43 = vst [vmem:[#allocation5] sm:$0xff] %v41
    %44 = vst [vmem:[#allocation5 + $0x8] sm:$0xff] %v42
    // Predicated region
    $region10: #{tpu_custom_call.1} parent=1 // pred_check
      _
    $region11: #{tpu_custom_call.1} parent=1 // pred_check_branch
      %46 = sbr.rel (0) target = $region13
    $region12: #{tpu_custom_call.1} parent=1 // pred_region
      %s48 = ssub.s32 256, 256
      %49 = vsyncadd [#allocation4], %s48
      %s50 = sshll.u32 [#allocation5], 4
      %s51 = int_to_ptr.vmem [resolvable:$true] %s50
      %56 = dma.vmem_to_hbm [thread:$0]  %s51, 256, %s1, [#allocation4], 128, 128, 8
    $region13: #{tpu_custom_call.1} parent=1 // pred_fallthru
      _
    // Predicated region
    $region14: #{tpu_custom_call.1} parent=1 // pred_check
      _
    $region15: #{tpu_custom_call.1} parent=1 // pred_check_branch
      %58 = sbr.rel (0) target = $region17
    $region16: #{tpu_custom_call.1} parent=1 // pred_region
      %59 = dma.done [#allocation4], 256
    $region17: #{tpu_custom_call.1} parent=1 // pred_fallthru
      _
    %60 = vsyncpa [#allocation3], 1
    %61 = vsyncpa [#allocation4], 1

</llo_original>
